<compile_context>
chip_gen: v7x
topology: tpu7x:2x2x1
jax: 0.10.0
libtpu: 0.0.40
codegen_flags: <defaults>
</compile_context>

<pallas_src>
import functools

import jax
import jax.numpy as jnp
from jax.experimental import pallas as pl
from jax.experimental.pallas import tpu as pltpu


def _round_up(x, m):
    return ((x + m - 1) // m) * m


# ----------------------------------------------------------------------------
# TPU generation / VMEM helpers (per-generation tuning knobs).
# ----------------------------------------------------------------------------
def _tpu_generation():
    try:
        kind = jax.devices()[0].device_kind.lower()
    except Exception:
        return "other"
    if "v5 lite" in kind or "v5e" in kind or "v5litepod" in kind:
        return "v5e"
    if "v6" in kind:
        return "v6e"
    if "v7" in kind:
        return "v7x"
    return "other"


def _vmem_capacity_bytes(gen):
    try:
        return int(pltpu.get_tpu_info().vmem_capacity_bytes)
    except Exception:
        return (64 << 20) if gen == "v7x" else (128 << 20)


def _select_tm(n, gen):
    big = 256 if gen == "v7x" else 512          # v7x: 64 MiB VMEM, keep tiles modest
    if n >= big:
        return big
    if n >= 256:
        return 256
    if n >= 128:
        return 128
    return max(16, _round_up(max(n, 1), 16))    # bf16 packs 16 rows / sublane tile


# ----------------------------------------------------------------------------
# Pallas kernel #1: ROI-Align (sampling_ratio=1, bilinear, average).
# Per grid step (one ROI): gather that ROI's image features via a
# scalar-prefetch-driven index_map, then bilinear-interpolate with two small
# matmuls:   pooled = Ay @ feat_nhwc @ (Ax ⊗ I_C).
# Output is written directly as the bf16 slab the FC head consumes.
# TODO(synk): at production ROI counts, tile several batch-sorted ROIs per
#             grid step for lane-dense output stores / fewer grid steps, and
#             replace the (Ax ⊗ I_C) Kron (O(C^2)) with a per-channel form.
# ----------------------------------------------------------------------------
def _roi_align_kernel(bidx_ref, ay_ref, bx_ref, feat_ref, out_ref):
    del bidx_ref                       # consumed by the feature-block index_map
    ay = ay_ref[0]                     # [ps, H]      f32
    bx = bx_ref[0]                     # [W*C, ps*C]  f32
    feat = feat_ref[0]                 # [H, W*C]     f32
    tmp = jnp.dot(ay, feat, preferred_element_type=jnp.float32)   # y-interp
    res = jnp.dot(tmp, bx, preferred_element_type=jnp.float32)    # x-interp
    out_ref[0] = res.astype(out_ref.dtype)                        # bf16 store


def _roi_align_prepare(rois, stride, pool_size, h, w, c, n_pad):
    """Per-ROI interpolation matrices (tiny, O(N*ps*(H+W)) scalar work)."""
    ps = pool_size
    n = rois.shape[0]
    x1 = rois[:, 1] / stride
    y1 = rois[:, 2] / stride
    x2 = rois[:, 3] / stride
    y2 = rois[:, 4] / stride
    roi_w = jnp.maximum(x2 - x1, 1.0)
    roi_h = jnp.maximum(y2 - y1, 1.0)
    centers = jnp.arange(ps, dtype=jnp.float32) + 0.5
    sx = x1[:, None] + centers[None, :] * (roi_w / ps)[:, None]   # [N, ps]
    sy = y1[:, None] + centers[None, :] * (roi_h / ps)[:, None]

    def interp_matrix(s, size):
        s0f = jnp.clip(jnp.floor(s), 0.0, size - 1.0)
        s0 = s0f.astype(jnp.int32)
        s1 = jnp.clip(s0 + 1, 0, size - 1)
        frac = jnp.clip(s - s0f, 0.0, 1.0)
        cols = jnp.arange(size, dtype=jnp.int32)
        m0 = (cols[None, None, :] == s0[:, :, None]).astype(jnp.float32)
        m1 = (cols[None, None, :] == s1[:, :, None]).astype(jnp.float32)
        return m0 * (1.0 - frac)[:, :, None] + m1 * frac[:, :, None]   # [N, ps, size]

    ay = interp_matrix(sy, h)                                     # [N, ps, H]
    ax = interp_matrix(sx, w)                                     # [N, ps, W]
    # Bx[n, w*C+c', px*C+c] = Ax[n, px, w] * (c' == c)   (Ax ⊗ I_C, transposed)
    eye_c = jnp.eye(c, dtype=jnp.float32)
    bx = jnp.einsum("npw,ac->nwapc", ax, eye_c).reshape(n, w * c, ps * c)
    bidx = rois[:, 0].astype(jnp.int32)

    pad = n_pad - n
    ay = jnp.pad(ay, ((0, pad), (0, 0), (0, 0)))
    bx = jnp.pad(bx, ((0, pad), (0, 0), (0, 0)))
    bidx = jnp.pad(bidx, (0, pad))
    return bidx, ay, bx


def roi_align_pallas(features, rois, stride, pool_size, n_pad):
    """features: [B, C, H, W] f32; rois: [N, >=5].
    Returns pooled features [n_pad, ps, ps*C] bf16 in (py, px, c) order."""
    b, c, h, w = features.shape
    ps = pool_size
    # One-time per-image NHWC layout pass (replaces the old per-ROI transpose).
    feat_nhwc = jnp.transpose(features, (0, 2, 3, 1)).reshape(b, h, w * c)
    bidx, ay, bx = _roi_align_prepare(rois, stride, ps, h, w, c, n_pad)

    grid_spec = pltpu.PrefetchScalarGridSpec(
        num_scalar_prefetch=1,
        grid=(n_pad,),
        in_specs=[
            pl.BlockSpec((1, ps, h), lambda i, bix: (i, 0, 0)),        # Ay
            pl.BlockSpec((1, w * c, ps * c), lambda i, bix: (i, 0, 0)),  # Ax ⊗ I_C
            pl.BlockSpec((1, h, w * c), lambda i, bix: (bix[i], 0, 0)),  # feature gather
        ],
        out_specs=pl.BlockSpec((1, ps, ps * c), lambda i, bix: (i, 0, 0)),
    )
    return pl.pallas_call(
        _roi_align_kernel,
        out_shape=jax.ShapeDtypeStruct((n_pad, ps, ps * c), jnp.bfloat16),
        grid_spec=grid_spec,
        compiler_params=pltpu.CompilerParams(dimension_semantics=("parallel",)),
    )(bidx, ay, bx, feat_nhwc)


# ----------------------------------------------------------------------------
# Pallas kernel #2: fused FC head (fc1 -> relu -> fc2 -> relu -> [cls|loc])
# plus in-kernel softmax over the class lanes.
# ----------------------------------------------------------------------------
def _bbox_head_kernel(x_ref, w1_ref, b1_ref, w2_ref, b2_ref, wh_ref, bh_ref,
                      out_ref, prob_ref, *, num_classes):
    x = x_ref[...]                                                       # [TM, F] bf16
    h1 = jnp.dot(x, w1_ref[...], preferred_element_type=jnp.float32)
    h1 = jnp.maximum(h1 + b1_ref[...], 0.0).astype(jnp.bfloat16)         # fused relu+cast
    h2 = jnp.dot(h1, w2_ref[...], preferred_element_type=jnp.float32)
    h2 = jnp.maximum(h2 + b2_ref[...], 0.0).astype(jnp.bfloat16)
    fused = jnp.dot(h2, wh_ref[...],
                    preferred_element_type=jnp.float32) + bh_ref[...]    # [TM, OUTP]
    out_ref[...] = fused                                                 # fp32 blob (spec)

    # softmax over the first `num_classes` lanes of the fused slab
    lane = jax.lax.broadcasted_iota(jnp.int32, fused.shape, dimension=1)
    logits = jnp.where(lane < num_classes, fused, -jnp.inf)
    m = jnp.max(logits, axis=-1, keepdims=True)
    e = jnp.exp(logits - m)                                              # exp(-inf)=0 on pads
    s = jnp.sum(e, axis=-1, keepdims=True)
    prob_ref[...] = (e * pl.reciprocal(s, approx=True)).astype(prob_ref.dtype)


# ----------------------------------------------------------------------------
# Parameter packing: permute w1 rows to the ROI-Align kernel's (py, px, c)
# feature order, pad H to the MXU width, cast weights to bf16, keep fp32
# biases as tiny resident rows.
# ----------------------------------------------------------------------------
def pack_bbox_head_params(params, *, inplanes, pool_size, lane_align=128):
    w1, b1 = params["w1"], params["b1"]          # torch (C, ps, ps)-flatten row order
    w2, b2 = params["w2"], params["b2"]
    wc, bc = params["wc"], params["bc"]
    wl, bl = params["wl"], params["bl"]
    f, hdim = w1.shape
    nc, nl = wc.shape[1], wl.shape[1]
    ps, c = pool_size, inplanes
    assert f == c * ps * ps
    hp = _round_up(hdim, lane_align)
    outp = _round_up(nc + nl, 128)

    # Permute w1 rows: kernel row j = (py, px, c) maps to torch row c*ps*ps+py*ps+px.
    py, px, ci = jnp.meshgrid(jnp.arange(ps), jnp.arange(ps), jnp.arange(c),
                              indexing="ij")
    src = (ci * ps * ps + py * ps + px).reshape(-1)
    w1 = w1[src, :]

    w1p = jnp.zeros((f, hp), jnp.float32).at[:, :hdim].set(w1)
    w2p = jnp.zeros((hp, hp), jnp.float32).at[:hdim, :hdim].set(w2)
    whp = jnp.zeros((hp, outp), jnp.float32)
    whp = whp.at[:hdim, :nc].set(wc).at[:hdim, nc:nc + nl].set(wl)
    b1p = jnp.zeros((1, hp), jnp.float32).at[0, :hdim].set(b1)
    b2p = jnp.zeros((1, hp), jnp.float32).at[0, :hdim].set(b2)
    bhp = jnp.zeros((1, outp), jnp.float32)
    bhp = bhp.at[0, :nc].set(bc).at[0, nc:nc + nl].set(bl)

    return {
        "w1": w1p.astype(jnp.bfloat16), "b1": b1p,
        "w2": w2p.astype(jnp.bfloat16), "b2": b2p,
        "wh": whp.astype(jnp.bfloat16), "bh": bhp,
        "F": f, "H": hdim, "NC": nc, "NL": nl, "Hp": hp, "OUTP": outp,
    }


# ----------------------------------------------------------------------------
# Head wrapper: tile over ROIs, weights VMEM-resident (single-buffered where
# supported), per-generation TM / VMEM limit.
# TODO(synk): at production F (~12.5K) add a K grid axis ('arbitrary') with an
#             fp32 VMEM accumulator for fc1 if weights exceed the v7x budget.
# ----------------------------------------------------------------------------
def bbox_head_pallas(x, packed, *, n_valid, tm, gen):
    n_pad, f = x.shape
    assert f == packed["F"]
    hp, outp = packed["Hp"], packed["OUTP"]
    nc, nl = packed["NC"], packed["NL"]
    grid = (n_pad // tm,)

    cap_frac = 0.80 if gen == "v7x" else 0.85      # ~51 MiB on v7x, ~109 MiB on v5e/v6e
    cap = int(cap_frac * _vmem_capacity_bytes(gen))
    kernel = functools.partial(_bbox_head_kernel, num_classes=nc)

    def run(single_buffer_weights):
        def wspec(shape):
            if single_buffer_weights:
                return pl.BlockSpec(shape, lambda i: (0, 0),
                                    pipeline_mode=pl.Buffered(1))
            return pl.BlockSpec(shape, lambda i: (0, 0))

        wbuf = 1 if single_buffer_weights else 2
        need = (
            2 * tm * f * 2                                   # x tile, bf16, double-buffered
            + wbuf * (f * hp + hp * hp + hp * outp) * 2      # weights, bf16
            + 2 * (2 * hp + outp) * 4                        # biases, fp32
            + 2 * tm * outp * (4 + 2)                        # fused fp32 + prob bf16 outputs
            + 2 * tm * hp * 4                                # fp32 intermediates headroom
        )
        vmem_limit = int(min(max(need * 3 // 2, 4 << 20), cap))

        return pl.pallas_call(
            kernel,
            out_shape=(jax.ShapeDtypeStruct((n_pad, outp), jnp.float32),
                       jax.ShapeDtypeStruct((n_pad, outp), jnp.bfloat16)),
            grid=grid,
            in_specs=[
                pl.BlockSpec((tm, f), lambda i: (i, 0)),     # activations: tiled over N
                wspec((f, hp)),                              # resident weights
                pl.BlockSpec((1, hp), lambda i: (0, 0)),     # resident fp32 biases
                wspec((hp, hp)),
                pl.BlockSpec((1, hp), lambda i: (0, 0)),
                wspec((hp, outp)),
                pl.BlockSpec((1, outp), lambda i: (0, 0)),
            ],
            out_specs=(pl.BlockSpec((tm, outp), lambda i: (i, 0)),
                       pl.BlockSpec((tm, outp), lambda i: (i, 0))),
            compiler_params=pltpu.CompilerParams(
                dimension_semantics=("parallel",),
                vmem_limit_bytes=vmem_limit),
        )(x, packed["w1"], packed["b1"], packed["w2"], packed["b2"],
          packed["wh"], packed["bh"])

    try:
        fused, prob = run(True)
    except Exception:
        # TODO(synk): pl.Buffered(1) single-buffering not accepted on this jax
        # build; fall back to default double-buffered resident weights.
        fused, prob = run(False)

    cls_pred = fused[:n_valid, :nc]
    loc_pred = fused[:n_valid, nc:nc + nl]
    cls_prob = prob[:n_valid, :nc].astype(jnp.float32)
    return cls_pred, cls_prob, loc_pred


# ----------------------------------------------------------------------------
# Bbox decoding (predict_bboxes, simplified).
# TODO(synk): per-class NMS / score thresholding of the reference
#             predict_bboxes is not reproduced (dynamic-shape post-processing).
# ----------------------------------------------------------------------------
def decode_bboxes(rois, cls_prob, loc_pred, image_info, num_classes):
    n = rois.shape[0]
    fg_prob = cls_prob[:, 1:]                                 # drop background
    cls_idx = jnp.argmax(fg_prob, axis=1) + 1                 # [N]
    score = jnp.take_along_axis(cls_prob, cls_idx[:, None], axis=1)[:, 0]
    loc = loc_pred.reshape(n, num_classes, 4)
    deltas = jnp.take_along_axis(loc, cls_idx[:, None, None], axis=1)[:, 0]

    x1, y1, x2, y2 = rois[:, 1], rois[:, 2], rois[:, 3], rois[:, 4]
    pw = x2 - x1 + 1.0
    ph = y2 - y1 + 1.0
    px = x1 + 0.5 * (pw - 1.0)
    py = y1 + 0.5 * (ph - 1.0)
    dx, dy, dw, dh = deltas[:, 0], deltas[:, 1], deltas[:, 2], deltas[:, 3]
    gx = px + pw * dx
    gy = py + ph * dy
    gw = pw * jnp.exp(dw)
    gh = ph * jnp.exp(dh)
    bi = rois[:, 0].astype(jnp.int32)
    img_h = image_info[bi, 0]
    img_w = image_info[bi, 1]
    nx1 = jnp.clip(gx - 0.5 * (gw - 1.0), 0.0, img_w - 1.0)
    ny1 = jnp.clip(gy - 0.5 * (gh - 1.0), 0.0, img_h - 1.0)
    nx2 = jnp.clip(gx + 0.5 * (gw - 1.0), 0.0, img_w - 1.0)
    ny2 = jnp.clip(gy + 0.5 * (gh - 1.0), 0.0, img_h - 1.0)
    dt = jnp.stack([rois[:, 0], nx1, ny1, nx2, ny2, score,
                    cls_idx.astype(jnp.float32)], axis=1)
    return dt, score


# ----------------------------------------------------------------------------
# BboxNet forward (inference / 'val' branch).
# TODO(synk): BboxNet.predict is abstract in the reference; a standard
#             two-FC R-CNN head is instantiated deterministically here.
# ----------------------------------------------------------------------------
def bbox_net_forward(inp, packed, *, pool_size, num_classes):
    features = inp["features"][0]            # single level (no FPN in this cfg)
    stride = inp["strides"][0]
    rois = inp["dt_bboxes"]                  # [N, 7]
    image_info = inp["image_info"]           # [B, 5]
    n = rois.shape[0]

    gen = _tpu_generation()
    tm = _select_tm(n, gen)
    n_tiles = -(-n // tm)
    if gen == "v7x" and n_tiles > 1 and (n_tiles % 2):
        n_tiles += 1                         # even grid across the 2 TensorCores
    n_pad = n_tiles * tm

    pooled = roi_align_pallas(features, rois, stride, pool_size, n_pad)
    x = pooled.reshape(n_pad, -1)            # free trailing-dim merge, already bf16

    cls_pred, cls_prob, loc_pred = bbox_head_pallas(
        x, packed, n_valid=n, tm=tm, gen=gen)
    dt_bboxes, selected_pred_cls = decode_bboxes(
        rois, cls_prob, loc_pred, image_info, num_classes)

    return {
        "dt_bboxes": dt_bboxes,
        "pred_cls_prob": selected_pred_cls,
        "BboxNet.blobs.classification": cls_pred,
        "BboxNet.blobs.localization": loc_pred,
    }


# ----------------------------------------------------------------------------
# Pure-JAX ROI-Align reference (validation only; NOT on the forward path).
# ----------------------------------------------------------------------------
def roi_align_reference(features, rois, stride, pool_size):
    b, c, h, w = features.shape
    ps = pool_size
    feats_nhwc = jnp.transpose(features, (0, 2, 3, 1))        # [B, H, W, C]

    def one_roi(roi):
        bi = roi[0].astype(jnp.int32)
        feat = feats_nhwc[bi]
        x1, y1, x2, y2 = roi[1] / stride, roi[2] / stride, roi[3] / stride, roi[4] / stride
        roi_w = jnp.maximum(x2 - x1, 1.0)
        roi_h = jnp.maximum(y2 - y1, 1.0)
        xs = x1 + (jnp.arange(ps, dtype=jnp.float32) + 0.5) * (roi_w / ps)
        ys = y1 + (jnp.arange(ps, dtype=jnp.float32) + 0.5) * (roi_h / ps)
        yy, xx = jnp.meshgrid(ys, xs, indexing="ij")
        x0f = jnp.clip(jnp.floor(xx), 0.0, w - 1.0)
        y0f = jnp.clip(jnp.floor(yy), 0.0, h - 1.0)
        x0 = x0f.astype(jnp.int32)
        y0 = y0f.astype(jnp.int32)
        x1i = jnp.clip(x0 + 1, 0, w - 1)
        y1i = jnp.clip(y0 + 1, 0, h - 1)
        lx = jnp.clip(xx - x0f, 0.0, 1.0)[..., None]
        ly = jnp.clip(yy - y0f, 0.0, 1.0)[..., None]
        v00 = feat[y0, x0]
        v01 = feat[y0, x1i]
        v10 = feat[y1i, x0]
        v11 = feat[y1i, x1i]
        top = v00 * (1.0 - lx) + v01 * lx
        bot = v10 * (1.0 - lx) + v11 * lx
        return top * (1.0 - ly) + bot * ly                    # [ps, ps, C]

    return jax.vmap(one_roi)(rois)                            # [N, ps, ps, C]


def init_params(key, feat_dim, hidden, num_classes):
    ks = jax.random.split(key, 4)

    def w(k, shape, scale=0.05):
        return (scale * jax.random.normal(k, shape)).astype(jnp.float32)

    return {
        "w1": w(ks[0], (feat_dim, hidden)),
        "b1": jnp.zeros((hidden,), jnp.float32),
        "w2": w(ks[1], (hidden, hidden)),
        "b2": jnp.zeros((hidden,), jnp.float32),
        "wc": w(ks[2], (hidden, num_classes), 0.01),
        "bc": jnp.zeros((num_classes,), jnp.float32),
        "wl": w(ks[3], (hidden, num_classes * 4), 0.001),
        "bl": jnp.zeros((num_classes * 4,), jnp.float32),
    }


if __name__ == "__main__":
    key = jax.random.PRNGKey(0)

    # Config: inplanes=4, num_classes=5 (incl. background), pool_size=4, stride=8.
    B, C, Hf, Wf = 2, 4, 16, 16
    stride = 8
    pool_size = 4
    num_classes = 5
    hidden = 64
    N_rois = 8
    img_h, img_w = Hf * stride, Wf * stride     # 128 x 128

    k_feat, k_roi, k_par = jax.random.split(key, 3)
    features = jax.random.normal(k_feat, (B, C, Hf, Wf), dtype=jnp.float32)

    # rois: [N, 7] = (batch_ix, x1, y1, x2, y2, score, cls) in image coords.
    kx1, ky1, kw, kh, ks = jax.random.split(k_roi, 5)
    x1 = jax.random.uniform(kx1, (N_rois,), minval=0.0, maxval=img_w * 0.5)
    y1 = jax.random.uniform(ky1, (N_rois,), minval=0.0, maxval=img_h * 0.5)
    bw = jax.random.uniform(kw, (N_rois,), minval=16.0, maxval=img_w * 0.45)
    bh = jax.random.uniform(kh, (N_rois,), minval=16.0, maxval=img_h * 0.45)
    x2 = jnp.clip(x1 + bw, 0.0, img_w - 1.0)
    y2 = jnp.clip(y1 + bh, 0.0, img_h - 1.0)
    batch_ix = jnp.arange(N_rois, dtype=jnp.float32) % B
    score = jax.random.uniform(ks, (N_rois,))
    cls_col = jnp.zeros((N_rois,), jnp.float32)
    rois = jnp.stack([batch_ix, x1, y1, x2, y2, score, cls_col], axis=1)

    image_info = jnp.tile(
        jnp.array([[img_h, img_w, 1.0, img_h, img_w]], jnp.float32), (B, 1))

    params = init_params(k_par, C * pool_size * pool_size, hidden, num_classes)
    gen = _tpu_generation()
    lane_align = 256 if gen in ("v6e", "v7x") else 128   # match the 256-wide MXU
    packed = pack_bbox_head_params(params, inplanes=C, pool_size=pool_size,
                                   lane_align=lane_align)

    inp = {
        "features": [features],
        "strides": [float(stride)],
        "dt_bboxes": rois,
        "image_info": image_info,
        "runner_mode": "val",
    }

    out = bbox_net_forward(inp, packed, pool_size=pool_size,
                           num_classes=num_classes)
    jax.block_until_ready(out["dt_bboxes"])
    jax.block_until_ready(out["pred_cls_prob"])

    # ---- shape / sanity checks ------------------------------------------
    assert out["dt_bboxes"].shape == (N_rois, 7)
    assert out["pred_cls_prob"].shape == (N_rois,)
    assert out["BboxNet.blobs.classification"].shape == (N_rois, num_classes)
    assert out["BboxNet.blobs.localization"].shape == (N_rois, num_classes * 4)
    assert bool(jnp.all(jnp.isfinite(out["dt_bboxes"])))
    assert bool(jnp.all(out["pred_cls_prob"] >= 0.0))
    assert bool(jnp.all(out["pred_cls_prob"] <= 1.05))

    # ---- numerical checks vs a pure-JAX reference ------------------------
    pooled_ref = roi_align_reference(features, rois, float(stride), pool_size)
    pooled_pal = roi_align_pallas(features, rois, float(stride), pool_size,
                                  _round_up(N_rois, 16))
    pooled_pal = pooled_pal[:N_rois].reshape(
        N_rois, pool_size, pool_size, C).astype(jnp.float32)
    assert bool(jnp.allclose(pooled_pal, pooled_ref, atol=3e-2, rtol=3e-2))

    def _bf(a):
        return a.astype(jnp.bfloat16).astype(jnp.float32)

    x_torch = jnp.transpose(pooled_ref, (0, 3, 1, 2)).reshape(N_rois, -1)
    h1 = jnp.maximum(_bf(x_torch) @ _bf(params["w1"]) + params["b1"], 0.0)
    h2 = jnp.maximum(_bf(h1) @ _bf(params["w2"]) + params["b2"], 0.0)
    cls_ref = _bf(h2) @ _bf(params["wc"]) + params["bc"]
    loc_ref = _bf(h2) @ _bf(params["wl"]) + params["bl"]
    assert bool(jnp.allclose(out["BboxNet.blobs.classification"], cls_ref,
                             atol=2e-3, rtol=2e-2))
    assert bool(jnp.allclose(out["BboxNet.blobs.localization"], loc_ref,
                             atol=2e-3, rtol=2e-2))

    print("KERNEL_OK")
</pallas_src>

<mosaic_0001>
module attributes {stable_mosaic.version = 11 : i64} {
  func.func @_roi_align_kernel(%arg0: i32, %arg1: memref<16xi32, #tpu.memory_space<smem>>, %arg2: memref<1x4x16xf32, #tpu.memory_space<vmem>>, %arg3: memref<1x64x16xf32, #tpu.memory_space<vmem>>, %arg4: memref<1x16x64xf32, #tpu.memory_space<vmem>>, %arg5: memref<1x4x16xbf16, #tpu.memory_space<vmem>>) attributes {dimension_semantics = [#tpu.dimension_semantics<parallel>], iteration_bounds = array<i64: 16>, scalar_prefetch = 1 : i64, scratch_operands = 0 : i64, tpu.core_type = #tpu.core_type<tc>, window_params = [{transform_indices = @transform_0, window_bounds = array<i64: 1, 4, 16>}, {transform_indices = @transform_1, window_bounds = array<i64: 1, 64, 16>}, {transform_indices = @transform_2, window_bounds = array<i64: 1, 16, 64>}, {transform_indices = @transform_3, window_bounds = array<i64: 1, 4, 16>}]} {
    %c0 = arith.constant 0 : index
    %c0_0 = arith.constant 0 : index
    %c0_1 = arith.constant 0 : index
    %0 = vector.load %arg2[%c0, %c0_0, %c0_1] : memref<1x4x16xf32, #tpu.memory_space<vmem>>, vector<1x4x16xf32>
    %1 = vector.shape_cast %0 : vector<1x4x16xf32> to vector<4x16xf32>
    %c0_2 = arith.constant 0 : index
    %c0_3 = arith.constant 0 : index
    %c0_4 = arith.constant 0 : index
    %2 = vector.load %arg3[%c0_2, %c0_3, %c0_4] : memref<1x64x16xf32, #tpu.memory_space<vmem>>, vector<1x64x16xf32>
    %3 = vector.shape_cast %2 : vector<1x64x16xf32> to vector<64x16xf32>
    %c0_5 = arith.constant 0 : index
    %c0_6 = arith.constant 0 : index
    %c0_7 = arith.constant 0 : index
    %4 = vector.load %arg4[%c0_5, %c0_6, %c0_7] : memref<1x16x64xf32, #tpu.memory_space<vmem>>, vector<1x16x64xf32>
    %5 = vector.shape_cast %4 : vector<1x16x64xf32> to vector<16x64xf32>
    %cst = arith.constant dense<0.000000e+00> : vector<4x64xf32>
    %6 = tpu.matmul %1, %5, %cst {dimension_numbers = #tpu.dot_dimension_numbers<[1], [0], [0], [1], [0, 0, 1, 1], [], []>} : vector<4x16xf32>, vector<16x64xf32>, vector<4x64xf32> -> vector<4x64xf32>
    %cst_8 = arith.constant dense<0.000000e+00> : vector<4x16xf32>
    %7 = tpu.matmul %6, %3, %cst_8 {dimension_numbers = #tpu.dot_dimension_numbers<[1], [0], [0], [1], [0, 0, 1, 1], [], []>} : vector<4x64xf32>, vector<64x16xf32>, vector<4x16xf32> -> vector<4x16xf32>
    %8 = arith.truncf %7 : vector<4x16xf32> to vector<4x16xbf16>
    %c0_9 = arith.constant 0 : index
    %c0_10 = arith.constant 0 : index
    %c0_11 = arith.constant 0 : index
    %9 = vector.load %arg5[%c0_9, %c0_10, %c0_11] : memref<1x4x16xbf16, #tpu.memory_space<vmem>>, vector<1x4x16xbf16>
    %10 = vector.shape_cast %9 : vector<1x4x16xbf16> to vector<4x16xbf16>
    %11 = vector.shape_cast %8 : vector<4x16xbf16> to vector<1x4x16xbf16>
    tpu.vector_store %arg5[%c0_9, %c0_10, %c0_11], %11 {strides = array<i32>} : memref<1x4x16xbf16, #tpu.memory_space<vmem>>, vector<1x4x16xbf16>,
    return
  }
  func.func @transform_0(%arg0: i32, %arg1: memref<16xi32, #tpu.memory_space<smem>>) -> (i32, i32, i32) {
    %c0_i32 = arith.constant 0 : i32
    %c0_i32_0 = arith.constant 0 : i32
    %c0_i32_1 = arith.constant 0 : i32
    return %arg0, %c0_i32, %c0_i32_0 : i32, i32, i32
  }
  func.func @transform_1(%arg0: i32, %arg1: memref<16xi32, #tpu.memory_space<smem>>) -> (i32, i32, i32) {
    %c0_i32 = arith.constant 0 : i32
    %c0_i32_0 = arith.constant 0 : i32
    %c0_i32_1 = arith.constant 0 : i32
    return %arg0, %c0_i32, %c0_i32_0 : i32, i32, i32
  }
  func.func @transform_2(%arg0: i32, %arg1: memref<16xi32, #tpu.memory_space<smem>>) -> (i32, i32, i32) {
    %0 = arith.index_cast %arg0 : i32 to index
    %1 = memref.load %arg1[%0] : memref<16xi32, #tpu.memory_space<smem>>
    %c0_i32 = arith.constant 0 : i32
    %c0_i32_0 = arith.constant 0 : i32
    %c0_i32_1 = arith.constant 0 : i32
    return %1, %c0_i32, %c0_i32_0 : i32, i32, i32
  }
  func.func @transform_3(%arg0: i32, %arg1: memref<16xi32, #tpu.memory_space<smem>>) -> (i32, i32, i32) {
    %c0_i32 = arith.constant 0 : i32
    %c0_i32_0 = arith.constant 0 : i32
    %c0_i32_1 = arith.constant 0 : i32
    return %arg0, %c0_i32, %c0_i32_0 : i32, i32, i32
  }
}

</mosaic_0001>

<llo_original>
// kernel: tpu_custom_call.1
$region0: #{tpu_custom_call.1}
  #allocation0 [shape = 'u32[]', space=smem, size = 0x4, offset = 0x4, fixed_abs, tag = 'smem constant byte address 0x4 - core index']
  #allocation1 [shape = 'u32[144,128]{1,0:T(1,128)}', space=vmem, size = 0x12000, scoped, tag = 'internal scratch']
  #allocation2 [shape = 's32[1]{0}', space=sflag, size = 0x4, scoped, tag = 'scoped memory for tpu_custom_call.1']
  #allocation3 [shape = 'u8[512]{0}', space=smem, size = 0x200, scoped, tag = 'prefetched SMEM operand 0']
  %s0 = inlined_call_operand.vmem [shape: s32[16], index: 0, kind: input, shape index: {}]
  %s1 = inlined_call_operand.vmem [shape: f32[16,4,16], index: 1, kind: input, shape index: {}]
  %s2 = inlined_call_operand.vmem [shape: f32[16,64,16], index: 2, kind: input, shape index: {}]
  %s3 = inlined_call_operand.vmem [shape: f32[2,16,64], index: 3, kind: input, shape index: {}]
  %s4 = inlined_call_operand.hbm [shape: bf16[16,4,16], index: 4, kind: output, shape index: {}]
  %s5 = sld [smem:[#allocation0]]
  $region45: #{tpu_custom_call.1} parent=0
    _
  %s7 = ssub.s32 1, %s5
  %s8 = scalar_select 0, %s7, %s5
  %s9 = sshll.u32 %s0, 4
  %s10 = int_to_ptr.vmem [resolvable:$true] %s9
  %12 = dma.vmem_to_smem %s10, 16, [#allocation3], [#allocation2]
  %13 = dma.done [#allocation2], 16
  %14 = sfence
  $region1: #{tpu_custom_call.1} parent=0
    #allocation4 [shape = 'u8[2048]{0}', space=vmem, size = 0x800, scoped, tag = 'output window, operand 0']
    #allocation5 [shape = 's32[2]{0}', space=sflag, size = 0x8, scoped, tag = 'scoped memory for tpu_custom_call.1']
    %15 = vsyncpa [#allocation5], 0
    %s16 = scalar_lea.sflag [#allocation5], 1
    %17 = vsyncpa %s16, 0
    loop: start=0, step=1, limit=18
    $region2: #{tpu_custom_call.1} parent=1 // loop_pre_header
      _
    $region3: #{tpu_custom_call.1} parent=1 // loop_header
      %s19 = sphi 0, %s23
      %p20 = scmp.ge.s32.totalorder %s19, 18
      %s29 = sphi 0, %s31
      %s32 = sphi 0, %s29
      %s33 = sphi 0, %s32
      %s49 = sphi 0, %s33
      %s55 = sphi 0, %s57
      %s58 = sphi 0, %s55
      %s59 = sphi 0, %s58
      %s75 = sphi 0, %s59
      %s83 = sphi 0, %s85
      %s86 = sphi 0, %s83
      %s87 = sphi 0, %s86
      %s103 = sphi 0, %s87
      %s109 = sphi 0, %s111
      %s112 = sphi 0, %s109
      %s113 = sphi 0, %s112
      %s129 = sphi 0, %s113
    $region4: #{tpu_custom_call.1} parent=1 // loop_header_branch
      %22 = sbr.rel (%p20) target = $region8
    $region5: #{tpu_custom_call.1} parent=1 // loop_body
      %s24 = ssub.s32 %s19, 1
      %s25 = ssub.s32 %s19, 2
      %s26 = sadd.s32 %s19, 1
      %s27 = ssub.s32 %s19, %s26
      %p28 = scmp.eq.s32.totalorder %s27, 0
      %s30 = sadd.s32 %s29, 1
      %s31 = scalar_select %p28, %s29, %s30
      %p34 = pneg %p28
      %p35 = scmp.eq.s32.totalorder %s19, 15
      %p36 = por %p34, %p35
      %p37 = scmp.ne.s32.totalorder %s29, %s32
      %p38 = scmp.eq.s32.totalorder %s19, 0
      %p39 = por %p37, %p38
      %p40 = scmp.ne.s32.totalorder %s29, %s32
      %p41 = scmp.eq.s32.totalorder %s24, 15
      %p42 = por %p40, %p41
      %p43 = scmp.ne.s32.totalorder %s32, %s33
      %p44 = scmp.eq.s32.totalorder %s24, 0
      %p45 = por %p43, %p44
      %p46 = scmp.ne.s32.totalorder %s32, %s33
      %p47 = scmp.eq.s32.totalorder %s25, 15
      %p48 = por %p46, %p47
      %p50 = scmp.ne.s32.totalorder %s33, %s49
      %p51 = scmp.eq.s32.totalorder %s25, 0
      %p52 = por %p50, %p51
      %s53 = ssub.s32 %s19, %s26
      %p54 = scmp.eq.s32.totalorder %s53, 0
      %s56 = sadd.s32 %s55, 1
      %s57 = scalar_select %p54, %s55, %s56
      %p60 = pneg %p54
      %p61 = scmp.eq.s32.totalorder %s19, 15
      %p62 = por %p60, %p61
      %p63 = scmp.ne.s32.totalorder %s55, %s58
      %p64 = scmp.eq.s32.totalorder %s19, 0
      %p65 = por %p63, %p64
      %p66 = scmp.ne.s32.totalorder %s55, %s58
      %p67 = scmp.eq.s32.totalorder %s24, 15
      %p68 = por %p66, %p67
      %p69 = scmp.ne.s32.totalorder %s58, %s59
      %p70 = scmp.eq.s32.totalorder %s24, 0
      %p71 = por %p69, %p70
      %p72 = scmp.ne.s32.totalorder %s58, %s59
      %p73 = scmp.eq.s32.totalorder %s25, 15
      %p74 = por %p72, %p73
      %p76 = scmp.ne.s32.totalorder %s59, %s75
      %p77 = scmp.eq.s32.totalorder %s25, 0
      %p78 = por %p76, %p77
      %s79 = sld [smem:[#allocation3 + %s19]]
      %s80 = sld [smem:[#allocation3 + %s26]]
      %s81 = ssub.s32 %s79, %s80
      %p82 = scmp.eq.s32.totalorder %s81, 0
      %s84 = sadd.s32 %s83, 1
      %s85 = scalar_select %p82, %s83, %s84
      %p88 = pneg %p82
      %p89 = scmp.eq.s32.totalorder %s19, 15
      %p90 = por %p88, %p89
      %p91 = scmp.ne.s32.totalorder %s83, %s86
      %p92 = scmp.eq.s32.totalorder %s19, 0
      %p93 = por %p91, %p92
      %p94 = scmp.ne.s32.totalorder %s83, %s86
      %p95 = scmp.eq.s32.totalorder %s24, 15
      %p96 = por %p94, %p95
      %p97 = scmp.ne.s32.totalorder %s86, %s87
      %p98 = scmp.eq.s32.totalorder %s24, 0
      %p99 = por %p97, %p98
      %p100 = scmp.ne.s32.totalorder %s86, %s87
      %p101 = scmp.eq.s32.totalorder %s25, 15
      %p102 = por %p100, %p101
      %p104 = scmp.ne.s32.totalorder %s87, %s103
      %p105 = scmp.eq.s32.totalorder %s25, 0
      %p106 = por %p104, %p105
      %s107 = ssub.s32 %s19, %s26
      %p108 = scmp.eq.s32.totalorder %s107, 0
      %s110 = sadd.s32 %s109, 1
      %s111 = scalar_select %p108, %s109, %s110
      %p114 = pneg %p108
      %p115 = scmp.eq.s32.totalorder %s19, 15
      %p116 = por %p114, %p115
      %p117 = scmp.ne.s32.totalorder %s109, %s112
      %p118 = scmp.eq.s32.totalorder %s19, 0
      %p119 = por %p117, %p118
      %p120 = scmp.ne.s32.totalorder %s109, %s112
      %p121 = scmp.eq.s32.totalorder %s24, 15
      %p122 = por %p120, %p121
      %p123 = scmp.ne.s32.totalorder %s112, %s113
      %p124 = scmp.eq.s32.totalorder %s24, 0
      %p125 = por %p123, %p124
      %p126 = scmp.ne.s32.totalorder %s112, %s113
      %p127 = scmp.eq.s32.totalorder %s25, 15
      %p128 = por %p126, %p127
      %p130 = scmp.ne.s32.totalorder %s113, %s129
      %p131 = scmp.eq.s32.totalorder %s25, 0
      %p132 = por %p130, %p131
      %p133 = scmp.le.s32.totalorder 1, %s19
      %p134 = scmp.lt.s32.totalorder %s19, 17
      %p135 = pnand %p133, %p134
      %p136 = pneg %p135
      // Predicated region
      $region9: #{tpu_custom_call.1} parent=5 // pred_check
        _
      $region10: #{tpu_custom_call.1} parent=5 // pred_check_branch
        %138 = sbr.rel (%p135) target = $region12
      $region11: #{tpu_custom_call.1} parent=5 // pred_region
        %s139 = ssub.s32 %s19, 1
      $region12: #{tpu_custom_call.1} parent=5 // pred_fallthru
        _
      %p140 = scmp.lt.s32.totalorder %s19, 16
      // Predicated region
      $region13: #{tpu_custom_call.1} parent=5 // pred_check
        %p141 = pneg %p140
      $region14: #{tpu_custom_call.1} parent=5 // pred_check_branch
        %143 = sbr.rel (%p141) target = $region16
      $region15: #{tpu_custom_call.1} parent=5 // pred_region
        // Predicated region
        $region17: #{tpu_custom_call.1} parent=15 // pred_check
          %p144 = pneg %p39
        $region18: #{tpu_custom_call.1} parent=15 // pred_check_branch
          %146 = sbr.rel (%p144) target = $region20
        $region19: #{tpu_custom_call.1} parent=15 // pred_region
          %p147 = scmp.lt.s32.totalorder %s19, 15
          %s148 = scalar_select %p147, %s19, 15
          %s149 = smul.addr %s148, 4
          %s150 = scalar_lea.vmem %s1, %s149
        $region20: #{tpu_custom_call.1} parent=15 // pred_fallthru
          _
        // Predicated region
        $region21: #{tpu_custom_call.1} parent=15 // pred_check
          %p151 = pneg %p65
        $region22: #{tpu_custom_call.1} parent=15 // pred_check_branch
          %153 = sbr.rel (%p151) target = $region24
        $region23: #{tpu_custom_call.1} parent=15 // pred_region
          %p154 = scmp.lt.s32.totalorder %s19, 15
          %s155 = scalar_select %p154, %s19, 15
          %s156 = smul.addr %s155, 8
          %s157 = smul.addr %s156, 8
          %s158 = scalar_lea.vmem %s2, %s157
        $region24: #{tpu_custom_call.1} parent=15 // pred_fallthru
          _
        // Predicated region
        $region25: #{tpu_custom_call.1} parent=15 // pred_check
          %p159 = pneg %p93
        $region26: #{tpu_custom_call.1} parent=15 // pred_check_branch
          %161 = sbr.rel (%p159) target = $region28
        $region27: #{tpu_custom_call.1} parent=15 // pred_region
          %s162 = sld [smem:[#allocation3 + %s19]]
          %p163 = scmp.lt.s32.totalorder %s162, 1
          %s164 = scalar_select %p163, %s162, 1
          %s165 = smul.addr %s164, 2
          %s166 = smul.addr %s165, 8
          %s167 = scalar_lea.vmem %s3, %s166
          %s168 = sld [smem:[#allocation3 + %s19]]
        $region28: #{tpu_custom_call.1} parent=15 // pred_fallthru
          _
      $region16: #{tpu_custom_call.1} parent=5 // pred_fallthru
        _
      %p169 = scmp.le.s32.totalorder 1, %s19
      %p170 = scmp.lt.s32.totalorder %s19, 17
      %p171 = pnand %p169, %p170
      %p172 = pneg %p171
      // Predicated region
      $region29: #{tpu_custom_call.1} parent=5 // pred_check
        _
      $region30: #{tpu_custom_call.1} parent=5 // pred_check_branch
        %174 = sbr.rel (%p171) target = $region32
      $region31: #{tpu_custom_call.1} parent=5 // pred_region
        %s175 = ssub.s32 %s19, 1
        %p176 = scmp.lt.s32.totalorder %s24, 15
        %s177 = scalar_select %p176, %s24, 15
        %s178 = smul.addr %s177, 4
        %s179 = scalar_lea.vmem %s1, %s178
        %p180 = pneg %p45
        %p181 = pneg %p42
        %p182 = scmp.lt.s32.totalorder %s24, 15
        %s183 = scalar_select %p182, %s24, 15
        %s184 = smul.addr %s183, 8
        %s185 = smul.addr %s184, 8
        %s186 = scalar_lea.vmem %s2, %s185
        %p187 = pneg %p71
        %p188 = pneg %p68
        %s189 = sld [smem:[#allocation3 + %s24]]
        %p190 = scmp.lt.s32.totalorder %s189, 1
        %s191 = scalar_select %p190, %s189, 1
        %s192 = smul.addr %s191, 2
        %s193 = smul.addr %s192, 8
        %s194 = scalar_lea.vmem %s3, %s193
        %p195 = pneg %p99
        %p196 = pneg %p96
        %p197 = pneg %p125
        %p198 = pneg %p122
        %s199 = sand.u32 %s112, 1
        %s200 = scalar_lea.sflag [#allocation5], %s199
        %s201 = sand.u32 %s112, 1
        %s202 = smul.addr %s201, 2
        %s203 = scalar_lea.vmem [#allocation4], %s202
        %p204 = scmp.lt.s32.totalorder %s24, 15
        %s205 = scalar_select %p204, %s24, 15
        %s206 = smul.addr %s205, 4
        %s207 = scalar_lea.vmem %s1, %s206
        %p208 = scmp.lt.s32.totalorder %s24, 15
        %s209 = scalar_select %p208, %s24, 15
        %s210 = smul.addr %s209, 8
        %s211 = smul.addr %s210, 8
        %s212 = scalar_lea.vmem %s2, %s211
        %s213 = sld [smem:[#allocation3 + %s24]]
        %p214 = scmp.lt.s32.totalorder %s213, 1
        %s215 = scalar_select %p214, %s213, 1
        %s216 = smul.addr %s215, 2
        %s217 = smul.addr %s216, 8
        %s218 = scalar_lea.vmem %s3, %s217
        %s219 = sld [smem:[#allocation3 + %s24]]
        %v220 = vld [vmem:[%s207] sm:$0xf]
        %v221 = vld [vmem:[%s212] sm:$0xff]
        %v222 = vld [vmem:[%s212 + $0x8] sm:$0xff]
        %v223 = vld [vmem:[%s212 + $0x10] sm:$0xff]
        %v224 = vld [vmem:[%s212 + $0x18] sm:$0xff]
        %v225 = vld [vmem:[%s212 + $0x20] sm:$0xff]
        %v226 = vld [vmem:[%s212 + $0x28] sm:$0xff]
        %v227 = vld [vmem:[%s212 + $0x30] sm:$0xff]
        %v228 = vld [vmem:[%s212 + $0x38] sm:$0xff]
        %v229 = vld [vmem:[%s218] sm:$0xff]
        %v230 = vld [vmem:[%s218 + $0x8] sm:$0xff]
        %vm231 = vcmask 130048
        %v233 = vsel %vm231, %v220, 0
        %235 = vmatprep.subr.mxu0 0.0
        %236 = vmatpush1.msra.mxu0 %v229
        %237 = vmatprep.subr.mxu0 0.0
        %238 = vmatpush1.msra.mxu0 %v230
        %239 = vmatprep.subr.mxu0 0.0
        %240 = vmatpush1.msra.mxu0 0.0
        %241 = vmatprep.subr.mxu0 0.0
        %242 = vmatpush1.msra.mxu0 0.0
        %243 = vmatprep.subr.mxu0 0.0
        %244 = vmatpush1.msra.mxu0 0.0
        %245 = vmatprep.subr.mxu0 0.0
        %246 = vmatpush1.msra.mxu0 0.0
        %247 = vmatprep.subr.mxu0 0.0
        %248 = vmatpush1.msra.mxu0 0.0
        %249 = vmatprep.subr.mxu0 0.0
        %250 = vmatpush1.msra.mxu0 0.0
        %251 = vmatprep.subr.mxu0 0.0
        %252 = vmatpush1.msra.mxu0 0.0
        %253 = vmatprep.subr.mxu0 0.0
        %254 = vmatpush1.msra.mxu0 0.0
        %255 = vmatprep.subr.mxu0 0.0
        %256 = vmatpush1.msra.mxu0 0.0
        %257 = vmatprep.subr.mxu0 0.0
        %258 = vmatpush1.msra.mxu0 0.0
        %259 = vmatprep.subr.mxu0 0.0
        %260 = vmatpush1.msra.mxu0 0.0
        %261 = vmatprep.subr.mxu0 0.0
        %262 = vmatpush1.msra.mxu0 0.0
        %263 = vmatprep.subr.mxu0 0.0
        %264 = vmatpush1.msra.mxu0 0.0
        %265 = vmatprep.subr.mxu0 0.0
        %266 = vmatpush1.msra.mxu0 0.0
        %267 = vmatprep.subr.mxu0 0.0
        %268 = vmatpush1.msra.mxu0 0.0
        %269 = vmatprep.subr.mxu0 0.0
        %270 = vmatpush1.msra.mxu0 0.0
        %271 = vmatprep.subr.mxu0 0.0
        %272 = vmatpush1.msra.mxu0 0.0
        %273 = vmatprep.subr.mxu0 0.0
        %274 = vmatpush1.msra.mxu0 0.0
        %275 = vmatprep.subr.mxu0 0.0
        %276 = vmatpush1.msra.mxu0 0.0
        %277 = vmatprep.subr.mxu0 0.0
        %278 = vmatpush1.msra.mxu0 0.0
        %279 = vmatprep.subr.mxu0 0.0
        %280 = vmatpush1.msra.mxu0 0.0
        %281 = vmatprep.subr.mxu0 0.0
        %282 = vmatpush1.msra.mxu0 0.0
        %283 = vmatprep.subr.mxu0 0.0
        %284 = vmatpush1.msra.mxu0 0.0
        %285 = vmatprep.subr.mxu0 0.0
        %286 = vmatpush1.msra.mxu0 0.0
        %287 = vmatprep.subr.mxu0 0.0
        %288 = vmatpush1.msra.mxu0 0.0
        %289 = vmatprep.subr.mxu0 0.0
        %290 = vmatpush1.msra.mxu0 0.0
        %291 = vmatprep.subr.mxu0 0.0
        %292 = vmatpush1.msra.mxu0 0.0
        %293 = vmatprep.subr.mxu0 0.0
        %294 = vmatpush1.msra.mxu0 0.0
        %295 = vmatprep.subr.mxu0 0.0
        %296 = vmatpush1.msra.mxu0 0.0
        %297 = vmatprep.subr.mxu0 0.0
        %298 = vmatpush1.msra.mxu0 0.0
        %299 = vmatprep.mubr.f32.mxu0 0.0
        %300 = vmatmul.mubr.f32.gmra.mrb[0].mxu0 %v233
        %v301 = vpop.f32.mrb[0].mxu0
        %v302 = vadd.f32 0.0, %v301
        %v303 = vpop.f32.mrb[0].mxu0
        %304 = vdwg.mxu0
        %vm305 = vcmask 523264
        %v307 = vsel %vm305, %v302, 0
        %309 = vmatprep.subr.mxu0 0.0
        %310 = vmatpush1.msra.mxu0 %v221
        %311 = vmatprep.subr.mxu0 0.0
        %312 = vmatpush1.msra.mxu0 %v222
        %313 = vmatprep.subr.mxu0 0.0
        %314 = vmatpush1.msra.mxu0 %v223
        %315 = vmatprep.subr.mxu0 0.0
        %316 = vmatpush1.msra.mxu0 %v224
        %317 = vmatprep.subr.mxu0 0.0
        %318 = vmatpush1.msra.mxu0 %v225
        %319 = vmatprep.subr.mxu0 0.0
        %320 = vmatpush1.msra.mxu0 %v226
        %321 = vmatprep.subr.mxu0 0.0
        %322 = vmatpush1.msra.mxu0 %v227
        %323 = vmatprep.subr.mxu0 0.0
        %324 = vmatpush1.msra.mxu0 %v228
        %325 = vmatprep.subr.mxu0 0.0
        %326 = vmatpush1.msra.mxu0 0.0
        %327 = vmatprep.subr.mxu0 0.0
        %328 = vmatpush1.msra.mxu0 0.0
        %329 = vmatprep.subr.mxu0 0.0
        %330 = vmatpush1.msra.mxu0 0.0
        %331 = vmatprep.subr.mxu0 0.0
        %332 = vmatpush1.msra.mxu0 0.0
        %333 = vmatprep.subr.mxu0 0.0
        %334 = vmatpush1.msra.mxu0 0.0
        %335 = vmatprep.subr.mxu0 0.0
        %336 = vmatpush1.msra.mxu0 0.0
        %337 = vmatprep.subr.mxu0 0.0
        %338 = vmatpush1.msra.mxu0 0.0
        %339 = vmatprep.subr.mxu0 0.0
        %340 = vmatpush1.msra.mxu0 0.0
        %341 = vmatprep.subr.mxu0 0.0
        %342 = vmatpush1.msra.mxu0 0.0
        %343 = vmatprep.subr.mxu0 0.0
        %344 = vmatpush1.msra.mxu0 0.0
        %345 = vmatprep.subr.mxu0 0.0
        %346 = vmatpush1.msra.mxu0 0.0
        %347 = vmatprep.subr.mxu0 0.0
        %348 = vmatpush1.msra.mxu0 0.0
        %349 = vmatprep.subr.mxu0 0.0
        %350 = vmatpush1.msra.mxu0 0.0
        %351 = vmatprep.subr.mxu0 0.0
        %352 = vmatpush1.msra.mxu0 0.0
        %353 = vmatprep.subr.mxu0 0.0
        %354 = vmatpush1.msra.mxu0 0.0
        %355 = vmatprep.subr.mxu0 0.0
        %356 = vmatpush1.msra.mxu0 0.0
        %357 = vmatprep.subr.mxu0 0.0
        %358 = vmatpush1.msra.mxu0 0.0
        %359 = vmatprep.subr.mxu0 0.0
        %360 = vmatpush1.msra.mxu0 0.0
        %361 = vmatprep.subr.mxu0 0.0
        %362 = vmatpush1.msra.mxu0 0.0
        %363 = vmatprep.subr.mxu0 0.0
        %364 = vmatpush1.msra.mxu0 0.0
        %365 = vmatprep.subr.mxu0 0.0
        %366 = vmatpush1.msra.mxu0 0.0
        %367 = vmatprep.subr.mxu0 0.0
        %368 = vmatpush1.msra.mxu0 0.0
        %369 = vmatprep.subr.mxu0 0.0
        %370 = vmatpush1.msra.mxu0 0.0
        %371 = vmatprep.subr.mxu0 0.0
        %372 = vmatpush1.msra.mxu0 0.0
        %373 = vmatprep.mubr.f32.mxu0 0.0
        %374 = vmatmul.mubr.f32.gmra.mrb[0].mxu0 %v307
        %v375 = vpop.f32.mrb[0].mxu0
        %v376 = vadd.f32 0.0, %v375
        %v377 = vpop.f32.mrb[0].mxu0
        %378 = vdwg.mxu0
        %v379 = vpack.c.bf16 %v376, %v376
        %vm380 = vcmask 123904
        %381 = vst.msk [vmem:[%s203] sm:$0x3] %vm380, %v379
        %s382 = sand.u32 %s112, 1
        %s383 = scalar_lea.sflag [#allocation5], %s382
        %s384 = sand.u32 %s112, 1
        %s385 = smul.addr %s384, 2
        %s386 = scalar_lea.vmem [#allocation4], %s385
        // Predicated region
        $region33: #{tpu_custom_call.1} parent=31 // pred_check
          %p387 = pneg %p122
        $region34: #{tpu_custom_call.1} parent=31 // pred_check_branch
          %389 = sbr.rel (%p387) target = $region36
        $region35: #{tpu_custom_call.1} parent=31 // pred_region
          %s391 = ssub.s32 32, 32
          %392 = vsyncadd %s383, %s391
          %s393 = smul.addr %s24, 32
          %s394 = scalar_lea.hbm %s4, %s393
          %s396 = sshll.u32 %s386, 4
          %s397 = int_to_ptr.vmem [resolvable:$true] %s396
          %399 = dma.vmem_to_hbm [thread:$0]  %s397, 32, %s394, %s383
        $region36: #{tpu_custom_call.1} parent=31 // pred_fallthru
          _
      $region32: #{tpu_custom_call.1} parent=5 // pred_fallthru
        _
      %p400 = scmp.le.s32.totalorder 2, %s19
      // Predicated region
      $region37: #{tpu_custom_call.1} parent=5 // pred_check
        %p401 = pneg %p400
      $region38: #{tpu_custom_call.1} parent=5 // pred_check_branch
        %403 = sbr.rel (%p401) target = $region40
      $region39: #{tpu_custom_call.1} parent=5 // pred_region
        %s404 = ssub.s32 %s19, 2
        // Predicated region
        $region41: #{tpu_custom_call.1} parent=39 // pred_check
          %p405 = pneg %p128
        $region42: #{tpu_custom_call.1} parent=39 // pred_check_branch
          %407 = sbr.rel (%p405) target = $region44
        $region43: #{tpu_custom_call.1} parent=39 // pred_region
          %s408 = sand.u32 %s113, 1
          %s409 = scalar_lea.sflag [#allocation5], %s408
          %s410 = sand.u32 %s113, 1
          %s411 = smul.addr %s410, 2
          %s412 = scalar_lea.vmem [#allocation4], %s411
          %413 = dma.done %s409, 32
        $region44: #{tpu_custom_call.1} parent=39 // pred_fallthru
          _
      $region40: #{tpu_custom_call.1} parent=5 // pred_fallthru
        _
    $region6: #{tpu_custom_call.1} parent=1 // loop_footer
      %s23 = sadd.s32 1, %s19
    $region7: #{tpu_custom_call.1} parent=1 // loop_footer_branch
      %18 = sbr.rel target = $region3
    $region8: #{tpu_custom_call.1} parent=1 // loop_exit
      _
    %414 = vsyncpa [#allocation5], 1
    %s415 = scalar_lea.sflag [#allocation5], 1
    %416 = vsyncpa %s415, 1

</llo_original>
